<compile_context>
chip_gen: v6e
topology: v6e:2x2x1
jax: 0.10.0
libtpu: 0.0.40
codegen_flags: <defaults>
</compile_context>

<pallas_src>
import jax
import jax.numpy as jnp
from jax.experimental import pallas as pl
from jax.experimental.pallas import tpu as pltpu

K_PAD = 8        # in_features 3 padded to one sublane group
H_PAD = 128      # hidden 10 padded to one full lane width
OUT_PAD = 8      # out_features 7 padded to 8 (compact output)

MAX_SINGLE_STEP_ROWS = 4096   # single grid step up to this many batch rows
LARGE_BATCH_TILE = 2048       # batch tile beyond that


def mlp_kernel(x_ref, w1_ref, w2_ref, b1_ref, b2_ref, o_ref):
    # x_ref: (tb, K_PAD) bf16, w1_ref: (K_PAD, H_PAD) bf16, b1_ref: (1, H_PAD) f32
    # w2_ref: (H_PAD, OUT_PAD) bf16, b2_ref: (1, OUT_PAD) f32, o_ref: (tb, OUT_PAD) f32
    h = jnp.dot(x_ref[...], w1_ref[...], preferred_element_type=jnp.float32)
    h = jnp.maximum(h + b1_ref[...], 0.0)
    out = jnp.dot(h.astype(w2_ref.dtype), w2_ref[...],
                  preferred_element_type=jnp.float32)
    o_ref[...] = (out + b2_ref[...]).astype(o_ref.dtype)


def pack_params(w1, b1, w2, b2):
    """Pad weights to lane-dense bf16 blocks; keep biases as f32 rows."""
    W1p = jnp.zeros((K_PAD, H_PAD), jnp.float32).at[:3, :10].set(w1)
    W2p = jnp.zeros((H_PAD, OUT_PAD), jnp.float32).at[:10, :7].set(w2)
    b1p = jnp.zeros((1, H_PAD), jnp.float32).at[0, :10].set(b1)
    b2p = jnp.zeros((1, OUT_PAD), jnp.float32).at[0, :7].set(b2)
    return W1p.astype(jnp.bfloat16), W2p.astype(jnp.bfloat16), b1p, b2p


def _dim_semantics(num_steps):
    """Use CORE_PARALLEL on dual-TC chips (v7x) when there is work to split."""
    core_parallel = getattr(pltpu, "CORE_PARALLEL", None)
    try:
        kind = jax.devices()[0].device_kind.lower()
    except Exception:
        kind = ""
    if core_parallel is not None and num_steps >= 2 and "7" in kind:
        return (core_parallel,)
    return ("parallel",)


def mlp_forward(x, W1p, W2p, b1p, b2p):
    """x: (B, 3) f32.  Returns (B, 7) f32 == relu(x @ w1 + b1) @ w2 + b2."""
    B = x.shape[0]
    if B <= MAX_SINGLE_STEP_ROWS:
        B_pad = max(16, ((B + 15) // 16) * 16)   # bf16 sublane-pack friendly
        tb = B_pad
    else:
        tb = LARGE_BATCH_TILE
        B_pad = pl.cdiv(B, tb) * tb
    num_steps = B_pad // tb

    # One pad op: rows -> B_pad, features 3 -> K_PAD, bf16 at the boundary.
    x_pad = jnp.pad(x.astype(jnp.bfloat16), ((0, B_pad - B), (0, K_PAD - 3)))

    out_padded = pl.pallas_call(
        mlp_kernel,
        out_shape=jax.ShapeDtypeStruct((B_pad, OUT_PAD), jnp.float32),
        grid=(num_steps,),
        in_specs=[
            pl.BlockSpec((tb, K_PAD), lambda i: (i, 0)),
            pl.BlockSpec((K_PAD, H_PAD), lambda i: (0, 0)),
            pl.BlockSpec((H_PAD, OUT_PAD), lambda i: (0, 0)),
            pl.BlockSpec((1, H_PAD), lambda i: (0, 0)),
            pl.BlockSpec((1, OUT_PAD), lambda i: (0, 0)),
        ],
        out_specs=pl.BlockSpec((tb, OUT_PAD), lambda i: (i, 0)),
        compiler_params=pltpu.CompilerParams(
            dimension_semantics=_dim_semantics(num_steps),
        ),
    )(x_pad, W1p, W2p, b1p, b2p)

    return out_padded[:B, :7]


def init_params(key):
    # Deterministic init mimicking PyTorch Linear's uniform(-1/sqrt(fan_in), 1/sqrt(fan_in)).
    k1, k2, k3, k4 = jax.random.split(key, 4)
    bound1 = 1.0 / jnp.sqrt(3.0)
    bound2 = 1.0 / jnp.sqrt(10.0)
    w1 = jax.random.uniform(k1, (3, 10), jnp.float32, -bound1, bound1)
    b1 = jax.random.uniform(k2, (10,), jnp.float32, -bound1, bound1)
    w2 = jax.random.uniform(k3, (10, 7), jnp.float32, -bound2, bound2)
    b2 = jax.random.uniform(k4, (7,), jnp.float32, -bound2, bound2)
    return w1, b1, w2, b2


if __name__ == "__main__":
    key = jax.random.PRNGKey(0)
    k_x, k_p = jax.random.split(key)
    batch = 8
    x = jax.random.normal(k_x, (batch, 3), jnp.float32)
    w1, b1, w2, b2 = init_params(k_p)

    W1p, W2p, b1p, b2p = pack_params(w1, b1, w2, b2)
    out = mlp_forward(x, W1p, W2p, b1p, b2p)
    jax.block_until_ready(out)
    assert out.shape == (batch, 7)

    # Tight check against a reference using the same bf16 input/weight quantization.
    f32 = jnp.float32
    x_q = x.astype(jnp.bfloat16).astype(f32)
    w1_q = W1p[:3, :10].astype(f32)
    w2_q = W2p[:10, :7].astype(f32)
    h_q = jnp.maximum(x_q @ w1_q + b1, 0.0).astype(jnp.bfloat16).astype(f32)
    ref_q = h_q @ w2_q + b2
    assert jnp.allclose(out, ref_q, atol=1e-4, rtol=1e-4)

    # Loose check against the full-precision f32 forward (bf16 rounding only).
    ref = jnp.maximum(x @ w1 + b1, 0.0) @ w2 + b2
    assert jnp.allclose(out, ref, atol=5e-2, rtol=5e-2)
    print("KERNEL_OK")
</pallas_src>

<mosaic_0001>
module attributes {stable_mosaic.version = 11 : i64} {
  func.func @mlp_kernel(%arg0: i32, %arg1: memref<16x8xbf16, #tpu.memory_space<vmem>>, %arg2: memref<8x128xbf16, #tpu.memory_space<vmem>>, %arg3: memref<128x8xbf16, #tpu.memory_space<vmem>>, %arg4: memref<1x128xf32, #tpu.memory_space<vmem>>, %arg5: memref<1x8xf32, #tpu.memory_space<vmem>>, %arg6: memref<16x8xf32, #tpu.memory_space<vmem>>) attributes {dimension_semantics = [#tpu.dimension_semantics<parallel>], iteration_bounds = array<i64: 1>, scalar_prefetch = 0 : i64, scratch_operands = 0 : i64, tpu.core_type = #tpu.core_type<tc>, window_params = [{transform_indices = @transform_0, window_bounds = array<i64: 16, 8>}, {pipeline_mode = #tpu.pipeline_mode<synchronous>, transform_indices = @transform_1, window_bounds = array<i64: 8, 128>}, {pipeline_mode = #tpu.pipeline_mode<synchronous>, transform_indices = @transform_2, window_bounds = array<i64: 128, 8>}, {pipeline_mode = #tpu.pipeline_mode<synchronous>, transform_indices = @transform_3, window_bounds = array<i64: 1, 128>}, {pipeline_mode = #tpu.pipeline_mode<synchronous>, transform_indices = @transform_4, window_bounds = array<i64: 1, 8>}, {transform_indices = @transform_5, window_bounds = array<i64: 16, 8>}]} {
    %c0 = arith.constant 0 : index
    %c0_0 = arith.constant 0 : index
    %0 = vector.load %arg1[%c0, %c0_0] : memref<16x8xbf16, #tpu.memory_space<vmem>>, vector<16x8xbf16>
    %c0_1 = arith.constant 0 : index
    %c0_2 = arith.constant 0 : index
    %1 = vector.load %arg2[%c0_1, %c0_2] : memref<8x128xbf16, #tpu.memory_space<vmem>>, vector<8x128xbf16>
    %cst = arith.constant dense<0.000000e+00> : vector<16x128xf32>
    %2 = tpu.matmul %0, %1, %cst {dimension_numbers = #tpu.dot_dimension_numbers<[1], [0], [0], [1], [0, 0, 1, 1], [], []>} : vector<16x8xbf16>, vector<8x128xbf16>, vector<16x128xf32> -> vector<16x128xf32>
    %c0_3 = arith.constant 0 : index
    %c0_4 = arith.constant 0 : index
    %3 = vector.load %arg4[%c0_3, %c0_4] : memref<1x128xf32, #tpu.memory_space<vmem>>, vector<1x128xf32>
    %4 = vector.broadcast %3 : vector<1x128xf32> to vector<16x128xf32>
    %5 = arith.addf %2, %4 : vector<16x128xf32>
    %cst_5 = arith.constant 0.000000e+00 : f32
    %6 = vector.broadcast %cst_5 : f32 to vector<16x128xf32>
    %7 = arith.maximumf %5, %6 : vector<16x128xf32>
    %8 = arith.truncf %7 : vector<16x128xf32> to vector<16x128xbf16>
    %c0_6 = arith.constant 0 : index
    %c0_7 = arith.constant 0 : index
    %9 = vector.load %arg3[%c0_6, %c0_7] : memref<128x8xbf16, #tpu.memory_space<vmem>>, vector<128x8xbf16>
    %cst_8 = arith.constant dense<0.000000e+00> : vector<16x8xf32>
    %10 = tpu.matmul %8, %9, %cst_8 {dimension_numbers = #tpu.dot_dimension_numbers<[1], [0], [0], [1], [0, 0, 1, 1], [], []>} : vector<16x128xbf16>, vector<128x8xbf16>, vector<16x8xf32> -> vector<16x8xf32>
    %c0_9 = arith.constant 0 : index
    %c0_10 = arith.constant 0 : index
    %11 = vector.load %arg5[%c0_9, %c0_10] : memref<1x8xf32, #tpu.memory_space<vmem>>, vector<1x8xf32>
    %12 = vector.broadcast %11 : vector<1x8xf32> to vector<16x8xf32>
    %13 = arith.addf %10, %12 : vector<16x8xf32>
    %c0_11 = arith.constant 0 : index
    %c0_12 = arith.constant 0 : index
    %14 = vector.load %arg6[%c0_11, %c0_12] : memref<16x8xf32, #tpu.memory_space<vmem>>, vector<16x8xf32>
    tpu.vector_store %arg6[%c0_11, %c0_12], %13 {strides = array<i32>} : memref<16x8xf32, #tpu.memory_space<vmem>>, vector<16x8xf32>,
    return
  }
  func.func @transform_0(%arg0: i32) -> (i32, i32) {
    %c0_i32 = arith.constant 0 : i32
    %c0_i32_0 = arith.constant 0 : i32
    return %arg0, %c0_i32 : i32, i32
  }
  func.func @transform_1(%arg0: i32) -> (i32, i32) {
    %c0_i32 = arith.constant 0 : i32
    %c0_i32_0 = arith.constant 0 : i32
    %c0_i32_1 = arith.constant 0 : i32
    return %c0_i32, %c0_i32_0 : i32, i32
  }
  func.func @transform_2(%arg0: i32) -> (i32, i32) {
    %c0_i32 = arith.constant 0 : i32
    %c0_i32_0 = arith.constant 0 : i32
    %c0_i32_1 = arith.constant 0 : i32
    return %c0_i32, %c0_i32_0 : i32, i32
  }
  func.func @transform_3(%arg0: i32) -> (i32, i32) {
    %c0_i32 = arith.constant 0 : i32
    %c0_i32_0 = arith.constant 0 : i32
    %c0_i32_1 = arith.constant 0 : i32
    return %c0_i32, %c0_i32_0 : i32, i32
  }
  func.func @transform_4(%arg0: i32) -> (i32, i32) {
    %c0_i32 = arith.constant 0 : i32
    %c0_i32_0 = arith.constant 0 : i32
    %c0_i32_1 = arith.constant 0 : i32
    return %c0_i32, %c0_i32_0 : i32, i32
  }
  func.func @transform_5(%arg0: i32) -> (i32, i32) {
    %c0_i32 = arith.constant 0 : i32
    %c0_i32_0 = arith.constant 0 : i32
    return %arg0, %c0_i32 : i32, i32
  }
}

</mosaic_0001>

<llo_original>
// kernel: tpu_custom_call.1
$region0: #{tpu_custom_call.1}
  #allocation0 [shape = 'u32[]', space=smem, size = 0x4, offset = 0x4, fixed_abs, tag = 'smem constant byte address 0x4 - core index']
  #allocation1 [shape = 'u32[144,128]{1,0:T(1,128)}', space=vmem, size = 0x12000, scoped, tag = 'internal scratch']
  %s0 = inlined_call_operand.vmem [shape: bf16[16,8], index: 0, kind: input, shape index: {}]
  %s1 = inlined_call_operand.vmem [shape: bf16[8,128], index: 1, kind: input, shape index: {}]
  %s2 = inlined_call_operand.vmem [shape: bf16[128,8], index: 2, kind: input, shape index: {}]
  %s3 = inlined_call_operand.vmem [shape: f32[1,128], index: 3, kind: input, shape index: {}]
  %s4 = inlined_call_operand.vmem [shape: f32[1,8], index: 4, kind: input, shape index: {}]
  %s5 = inlined_call_operand.vmem [shape: f32[16,8], index: 5, kind: output, shape index: {}]
  %s6 = sld [smem:[#allocation0]]
  $region30: #{tpu_custom_call.1} parent=0
    _
  %s8 = ssub.s32 1, %s6
  %s9 = scalar_select 0, %s8, %s6
  // Predicated region
  $region2: #{tpu_custom_call.1} parent=0 // pred_check
    _
  $region3: #{tpu_custom_call.1} parent=0 // pred_check_branch
    %11 = sbr.rel (0) target = $region5
  $region4: #{tpu_custom_call.1} parent=0 // pred_region
    _
  $region5: #{tpu_custom_call.1} parent=0 // pred_fallthru
    _
  // Predicated region
  $region6: #{tpu_custom_call.1} parent=0 // pred_check
    _
  $region7: #{tpu_custom_call.1} parent=0 // pred_check_branch
    %13 = sbr.rel (0) target = $region9
  $region8: #{tpu_custom_call.1} parent=0 // pred_region
    _
  $region9: #{tpu_custom_call.1} parent=0 // pred_fallthru
    _
  // Predicated region
  $region10: #{tpu_custom_call.1} parent=0 // pred_check
    _
  $region11: #{tpu_custom_call.1} parent=0 // pred_check_branch
    %15 = sbr.rel (0) target = $region13
  $region12: #{tpu_custom_call.1} parent=0 // pred_region
    _
  $region13: #{tpu_custom_call.1} parent=0 // pred_fallthru
    _
  // Predicated region
  $region14: #{tpu_custom_call.1} parent=0 // pred_check
    _
  $region15: #{tpu_custom_call.1} parent=0 // pred_check_branch
    %17 = sbr.rel (0) target = $region17
  $region16: #{tpu_custom_call.1} parent=0 // pred_region
    _
  $region17: #{tpu_custom_call.1} parent=0 // pred_fallthru
    _
  // Predicated region
  $region18: #{tpu_custom_call.1} parent=0 // pred_check
    _
  $region19: #{tpu_custom_call.1} parent=0 // pred_check_branch
    %19 = sbr.rel (0) target = $region21
  $region20: #{tpu_custom_call.1} parent=0 // pred_region
    _
  $region21: #{tpu_custom_call.1} parent=0 // pred_fallthru
    _
  %v21 = vld [vmem:[%s0] sm:$0xf]
  %v22 = vld [vmem:[%s0 + $0x4] sm:$0xf]
  %v23 = vld [vmem:[%s1] sm:$0xf]
  %v24 = vld [vmem:[%s3] sm:$0x1]
  %v26 = vlaneseq
  %v27 = vshrl.u32 %v26, 7
  %v28 = vsub.s32 0, %v27
  %v29 = vrot.slane %v24, %v28
  %v33 = vunpack.c.l.b16 %v21
  %v34 = vunpack.c.l.b16 %v22
  %v35 = vpack.c.b16 %v34, %v33
  %vm36 = vcmask 64512
  %v38 = vsel %vm36, %v35, 0
  %vm40 = vcmask 1043456
  %v42 = vsel %vm40, %v23, 0
  %44 = vmatprep.subr.bf16.mxu0 0
  %45 = vmatpush1.bf16.msra.mxu0 0
  %46 = vmatprep.subr.bf16.mxu0 0
  %47 = vmatpush1.bf16.msra.mxu0 0
  %48 = vmatprep.subr.bf16.mxu0 0
  %49 = vmatpush1.bf16.msra.mxu0 0
  %50 = vmatprep.subr.bf16.mxu0 0
  %51 = vmatpush1.bf16.msra.mxu0 0
  %52 = vmatprep.subr.bf16.mxu0 0
  %53 = vmatpush1.bf16.msra.mxu0 0
  %54 = vmatprep.subr.bf16.mxu0 0
  %55 = vmatpush1.bf16.msra.mxu0 0
  %56 = vmatprep.subr.bf16.mxu0 0
  %57 = vmatpush1.bf16.msra.mxu0 0
  %58 = vmatprep.subr.bf16.mxu0 0
  %59 = vmatpush1.bf16.msra.mxu0 %v42
  %60 = vmatprep.subr.bf16.mxu0 0
  %61 = vmatpush2.bf16.msra.mxu0 0
  %62 = vmatprep.subr.bf16.mxu0 0
  %63 = vmatpush2.bf16.msra.mxu0 0
  %64 = vmatprep.subr.bf16.mxu0 0
  %65 = vmatpush2.bf16.msra.mxu0 0
  %66 = vmatprep.subr.bf16.mxu0 0
  %67 = vmatpush2.bf16.msra.mxu0 0
  %68 = vmatprep.subr.bf16.mxu0 0
  %69 = vmatpush2.bf16.msra.mxu0 0
  %70 = vmatprep.subr.bf16.mxu0 0
  %71 = vmatpush2.bf16.msra.mxu0 0
  %72 = vmatprep.subr.bf16.mxu0 0
  %73 = vmatpush2.bf16.msra.mxu0 0
  %74 = vmatprep.subr.bf16.mxu0 0
  %75 = vmatpush2.bf16.msra.mxu0 0
  %76 = vmatprep.mubr.bf16.mxu0 0
  %77 = vmatmul.mubr.bf16.gmra.mxu0 %v38
  %v78 = vpop.f32.mrf.mxu0
  %v79 = vadd.f32 %v29, %v78
  %v80 = vpop.f32.mrf.mxu0
  %v81 = vpop.f32.mrf.mxu0
  %v82 = vadd.f32 %v29, %v81
  %v83 = vpop.f32.mrf.mxu0
  %84 = vdwg.mxu0
  %v85 = vmax.f32 %v79, 0.0
  %v86 = vmax.f32 %v82, 0.0
  %v87 = vpack.c.bf16 %v86, %v85
  %v88 = vld [vmem:[%s2] sm:$0xf]
  %v89 = vld [vmem:[%s2 + $0x4] sm:$0xf]
  %v90 = vld [vmem:[%s2 + $0x8] sm:$0xf]
  %v91 = vld [vmem:[%s2 + $0xc] sm:$0xf]
  %v92 = vld [vmem:[%s2 + $0x10] sm:$0xf]
  %v93 = vld [vmem:[%s2 + $0x14] sm:$0xf]
  %v94 = vld [vmem:[%s2 + $0x18] sm:$0xf]
  %v95 = vld [vmem:[%s2 + $0x1c] sm:$0xf]
  %v96 = vld [vmem:[%s2 + $0x20] sm:$0xf]
  %v97 = vld [vmem:[%s2 + $0x24] sm:$0xf]
  %v98 = vld [vmem:[%s2 + $0x28] sm:$0xf]
  %v99 = vld [vmem:[%s2 + $0x2c] sm:$0xf]
  %v100 = vld [vmem:[%s2 + $0x30] sm:$0xf]
  %v101 = vld [vmem:[%s2 + $0x34] sm:$0xf]
  %v102 = vld [vmem:[%s2 + $0x38] sm:$0xf]
  %v103 = vld [vmem:[%s2 + $0x3c] sm:$0xf]
  %v104 = vld [vmem:[%s4] sm:$0x1]
  %v106 = vlaneseq
  %v107 = vshrl.u32 %v106, 7
  %v108 = vsub.s32 0, %v107
  %v109 = vrot.slane %v104, %v108
  %v127 = vunpack.c.l.b16 %v88
  %v128 = vunpack.c.l.b16 %v89
  %v129 = vunpack.c.l.b16 %v90
  %v130 = vunpack.c.l.b16 %v91
  %v131 = vunpack.c.l.b16 %v92
  %v132 = vunpack.c.l.b16 %v93
  %v133 = vunpack.c.l.b16 %v94
  %v134 = vunpack.c.l.b16 %v95
  %v135 = vunpack.c.l.b16 %v96
  %v136 = vunpack.c.l.b16 %v97
  %v137 = vunpack.c.l.b16 %v98
  %v138 = vunpack.c.l.b16 %v99
  %v139 = vunpack.c.l.b16 %v100
  %v140 = vunpack.c.l.b16 %v101
  %v141 = vunpack.c.l.b16 %v102
  %v142 = vunpack.c.l.b16 %v103
  %v143 = vpack.c.b16 %v128, %v127
  %v144 = vpack.c.b16 %v130, %v129
  %v145 = vpack.c.b16 %v132, %v131
  %v146 = vpack.c.b16 %v134, %v133
  %v147 = vpack.c.b16 %v136, %v135
  %v148 = vpack.c.b16 %v138, %v137
  %v149 = vpack.c.b16 %v140, %v139
  %v150 = vpack.c.b16 %v142, %v141
  %159 = vmatprep.subr.bf16.mxu0 0
  %160 = vmatpush1.bf16.msra.mxu0 %v150
  %161 = vmatprep.subr.bf16.mxu0 0
  %162 = vmatpush1.bf16.msra.mxu0 %v149
  %163 = vmatprep.subr.bf16.mxu0 0
  %164 = vmatpush1.bf16.msra.mxu0 %v148
  %165 = vmatprep.subr.bf16.mxu0 0
  %166 = vmatpush1.bf16.msra.mxu0 %v147
  %167 = vmatprep.subr.bf16.mxu0 0
  %168 = vmatpush1.bf16.msra.mxu0 %v146
  %169 = vmatprep.subr.bf16.mxu0 0
  %170 = vmatpush1.bf16.msra.mxu0 %v145
  %171 = vmatprep.subr.bf16.mxu0 0
  %172 = vmatpush1.bf16.msra.mxu0 %v144
  %173 = vmatprep.subr.bf16.mxu0 0
  %174 = vmatpush1.bf16.msra.mxu0 %v143
  %175 = vmatprep.subr.bf16.mxu0 0
  %176 = vmatpush2.bf16.msra.mxu0 0
  %177 = vmatprep.subr.bf16.mxu0 0
  %178 = vmatpush2.bf16.msra.mxu0 0
  %179 = vmatprep.subr.bf16.mxu0 0
  %180 = vmatpush2.bf16.msra.mxu0 0
  %181 = vmatprep.subr.bf16.mxu0 0
  %182 = vmatpush2.bf16.msra.mxu0 0
  %183 = vmatprep.subr.bf16.mxu0 0
  %184 = vmatpush2.bf16.msra.mxu0 0
  %185 = vmatprep.subr.bf16.mxu0 0
  %186 = vmatpush2.bf16.msra.mxu0 0
  %187 = vmatprep.subr.bf16.mxu0 0
  %188 = vmatpush2.bf16.msra.mxu0 0
  %189 = vmatprep.subr.bf16.mxu0 0
  %190 = vmatpush2.bf16.msra.mxu0 0
  %191 = vmatprep.mubr.bf16.mxu0 0
  %192 = vmatmul.mubr.bf16.gmra.mxu0 %v87
  %v193 = vpop.f32.mrf.mxu0
  %v194 = vadd.f32 %v109, %v193
  %v195 = vpop.f32.mrf.mxu0
  %v196 = vpop.f32.mrf.mxu0
  %v197 = vadd.f32 %v109, %v196
  %v198 = vpop.f32.mrf.mxu0
  %199 = vdwg.mxu0
  %200 = vst.msk [vmem:[%s5] sm:$0xff] %vm36, %v194
  %201 = vst.msk [vmem:[%s5 + $0x8] sm:$0xff] %vm36, %v197
  // Predicated region
  $region22: #{tpu_custom_call.1} parent=0 // pred_check
    _
  $region23: #{tpu_custom_call.1} parent=0 // pred_check_branch
    %203 = sbr.rel (0) target = $region25
  $region24: #{tpu_custom_call.1} parent=0 // pred_region
    _
  $region25: #{tpu_custom_call.1} parent=0 // pred_fallthru
    _
  // Predicated region
  $region26: #{tpu_custom_call.1} parent=0 // pred_check
    _
  $region27: #{tpu_custom_call.1} parent=0 // pred_check_branch
    %205 = sbr.rel (0) target = $region29
  $region28: #{tpu_custom_call.1} parent=0 // pred_region
    _
  $region29: #{tpu_custom_call.1} parent=0 // pred_fallthru
    _

</llo_original>
